<compile_context>
chip_gen: v7x
topology: tpu7x:2x2x1
jax: 0.10.0
libtpu: 0.0.40
codegen_flags: <defaults>
</compile_context>

<pallas_src>
import functools

import jax
import jax.numpy as jnp
from jax import lax
from jax.experimental import pallas as pl
from jax.experimental.pallas import tpu as pltpu


def _token_learner_kernel(x_ref, w1t_ref, b1_ref, w2bd_ref, b2_ref, o_ref, *, inv_n):
    # x_ref:    (1, N, C)      bf16  tokens of the current batch element
    # w1t_ref:  (C, G*INNER)   bf16  all-group conv1 weights, transposed & packed (grid-constant)
    # b1_ref:   (1, G*INNER)   f32
    # w2bd_ref: (G*INNER, G)   f32   conv2 weights as a block-diagonal matrix (grid-constant)
    # b2_ref:   (1, G)         f32
    # o_ref:    (1, G, C)      f32   out[b, :, :]
    x = x_ref[0]                                                                 # (N, C) bf16

    # conv1 for ALL groups at once (every group sees the same x): dense matmul on the MXU,
    # bf16 operands, f32 accumulation.  Output is G*INNER lanes wide (lane-full at real configs).
    h = jnp.dot(x, w1t_ref[...], preferred_element_type=jnp.float32) + b1_ref[...]   # (N, GI) f32

    # TODO(synk): PyTorch nn.GELU() default is the exact erf form; tanh-approx GELU is used here
    # for guaranteed Mosaic lowering (EUP tanh). Max deviation ~1e-3 relative.
    h = jax.nn.gelu(h, approximate=True)

    # conv2 (grouped 1x1, one output channel per group) == block-diagonal matmul; the MXU has
    # plenty of slack at these shapes, and this keeps the layout lane-aligned (no in-kernel reshape).
    attn = jnp.dot(h, w2bd_ref[...], preferred_element_type=jnp.float32) + b2_ref[...]  # (N, G) f32

    # spatial mean for ALL groups: out[g, c] = (1/N) * sum_n attn[n, g] * x[n, c]
    # transposed-LHS contraction in bf16 (native MXU path, no f32 copy of x), f32 accumulation.
    out = lax.dot_general(
        attn.astype(jnp.bfloat16), x,
        dimension_numbers=(((0,), (0,)), ((), ())),
        preferred_element_type=jnp.float32,
    ) * inv_n                                                                    # (G, C) f32
    o_ref[0] = out.astype(o_ref.dtype)


def token_learner_pallas(x_bchw, w1, b1, w2, b2, *, num_output_tokens, ff_mult):
    B, C, H, W = x_bchw.shape
    G = num_output_tokens
    INNER = C * ff_mult
    GI = G * INNER
    N = H * W
    out_dtype = x_bchw.dtype

    # ---- plain-JAX glue: layout / parameter packing ----
    # NCHW -> (B, N, C): tokens in sublanes, channels in lanes.  bf16 for the MXU.
    x_tok = jnp.transpose(x_bchw, (0, 2, 3, 1)).reshape(B, N, C).astype(jnp.bfloat16)
    # conv1 weight (G*INNER, C, 1, 1) -> packed transposed operand (C, G*INNER), bf16.
    w1t = jnp.transpose(w1.reshape(GI, C), (1, 0)).astype(jnp.bfloat16)
    b1r = b1.reshape(1, GI).astype(jnp.float32)
    # conv2 weight (G, INNER, 1, 1) -> block-diagonal (G*INNER, G) so all groups reduce in one matmul.
    w2g = w2.reshape(G, INNER).astype(jnp.float32)
    w2bd = (w2g[:, :, None] * jnp.eye(G, dtype=jnp.float32)[:, None, :]).reshape(GI, G)
    b2r = b2.reshape(1, G).astype(jnp.float32)

    kernel = functools.partial(_token_learner_kernel, inv_n=1.0 / N)

    # VMEM budget from the actual blocks (x2 for double-buffering of the pipelined x/out blocks,
    # plus the resident parameter slabs), with floor/ceiling safe for v5e..v7x (64 MiB on v7x).
    pipelined_bytes = (N * C * 2) + (G * C * 4)                  # x block + out block
    resident_bytes = (C * GI * 2) + (GI * 4) + (GI * G * 4) + (G * 4)
    vmem_limit = int(min(32 * 2**20, max(8 * 2**20, 4 * pipelined_bytes + 2 * resident_bytes)))

    cost = pl.CostEstimate(
        flops=int(B * (2 * N * C * GI + 2 * N * GI * G + 2 * N * G * C)),
        transcendentals=int(B * N * GI),
        bytes_accessed=int(B * N * C * 2 + C * GI * 2 + GI * 4 + GI * G * 4 + G * 4
                           + B * G * C * 4),
    )

    out3 = pl.pallas_call(
        kernel,
        out_shape=jax.ShapeDtypeStruct((B, G, C), jnp.float32),
        grid=(B,),
        in_specs=[
            pl.BlockSpec((1, N, C), lambda b: (b, 0, 0)),     # x: one batch element per step
            pl.BlockSpec((C, GI), lambda b: (0, 0)),          # conv1 weights: grid-constant, resident
            pl.BlockSpec((1, GI), lambda b: (0, 0)),          # conv1 bias:    grid-constant
            pl.BlockSpec((GI, G), lambda b: (0, 0)),          # conv2 weights (block-diag): constant
            pl.BlockSpec((1, G), lambda b: (0, 0)),           # conv2 bias:    grid-constant
        ],
        out_specs=pl.BlockSpec((1, G, C), lambda b: (b, 0, 0)),
        compiler_params=pltpu.CompilerParams(
            dimension_semantics=("parallel",),                # B across TCs on v7x; single TC elsewhere
            vmem_limit_bytes=vmem_limit,
        ),
        cost_estimate=cost,
    )(x_tok, w1t, b1r, w2bd, b2r)

    # lane-dense (B, G, C) kernel output -> module's (B, C, G)
    return jnp.transpose(out3, (0, 2, 1)).astype(out_dtype)


def token_learner_reference(x_bchw, w1, b1, w2, b2, *, num_output_tokens, ff_mult):
    """Pure-JAX reference mirroring the PyTorch grouped-conv formulation."""
    B, C, H, W = x_bchw.shape
    G = num_output_tokens
    INNER = C * ff_mult
    N = H * W
    xf = x_bchw.reshape(B, C, N)                                        # (B, C, N)
    w1g = w1.reshape(G, INNER, C)
    b1g = b1.reshape(G, INNER)
    h = jnp.einsum("gic,bcn->bgin", w1g, xf) + b1g[None, :, :, None]
    h = jax.nn.gelu(h, approximate=True)
    w2g = w2.reshape(G, INNER)
    attn = jnp.einsum("gi,bgin->bgn", w2g, h) + b2[None, :, None]       # (B, G, N)
    out = jnp.einsum("bcn,bgn->bcg", xf, attn) / N                      # (B, C, G)
    return out


if __name__ == "__main__":
    # Small shapes consistent with the module (dim=8, 8x8 spatial, G=8 output tokens, ff_mult=2).
    B, C, H, W = 2, 8, 8, 8
    G = 8            # num_output_tokens
    FF = 2           # ff_mult
    INNER = C * FF
    GI = G * INNER

    key = jax.random.PRNGKey(0)
    kx, k1, k2, k3, k4 = jax.random.split(key, 5)

    x = jax.random.normal(kx, (B, C, H, W), dtype=jnp.float32)
    # Conv2d(dim*G, inner_dim, 1, groups=G): weight (GI, C, 1, 1), bias (GI,)
    w1 = jax.random.normal(k1, (GI, C, 1, 1), dtype=jnp.float32) * 0.1
    b1 = jax.random.normal(k2, (GI,), dtype=jnp.float32) * 0.1
    # Conv2d(inner_dim, G, 1, groups=G): weight (G, INNER, 1, 1), bias (G,)
    w2 = jax.random.normal(k3, (G, INNER, 1, 1), dtype=jnp.float32) * 0.1
    b2 = jax.random.normal(k4, (G,), dtype=jnp.float32) * 0.1

    out = token_learner_pallas(x, w1, b1, w2, b2, num_output_tokens=G, ff_mult=FF)
    out = jax.block_until_ready(out)

    # Apples-to-apples reference: apply the same bf16 rounding the kernel applies to its MXU operands
    # (x and conv1 weights).  The kernel additionally rounds attn to bf16 for the final contraction,
    # which stays well inside the tolerance below.
    x_r = x.astype(jnp.bfloat16).astype(jnp.float32)
    w1_r = w1.astype(jnp.bfloat16).astype(jnp.float32)
    ref = token_learner_reference(x_r, w1_r, b1, w2, b2, num_output_tokens=G, ff_mult=FF)

    assert out.shape == (B, C, G), out.shape
    max_err = float(jnp.max(jnp.abs(out - ref)))
    assert jnp.allclose(out, ref, rtol=2e-3, atol=2e-3), max_err

    print("KERNEL_OK")
</pallas_src>

<mosaic_0001>
module attributes {stable_mosaic.version = 11 : i64} {
  func.func @_token_learner_kernel(%arg0: i32, %arg1: memref<1x64x8xbf16, #tpu.memory_space<vmem>>, %arg2: memref<8x128xbf16, #tpu.memory_space<vmem>>, %arg3: memref<1x128xf32, #tpu.memory_space<vmem>>, %arg4: memref<128x8xf32, #tpu.memory_space<vmem>>, %arg5: memref<1x8xf32, #tpu.memory_space<vmem>>, %arg6: memref<1x8x8xf32, #tpu.memory_space<vmem>>) attributes {dimension_semantics = [#tpu.dimension_semantics<parallel>], iteration_bounds = array<i64: 2>, scalar_prefetch = 0 : i64, scratch_operands = 0 : i64, tpu.core_type = #tpu.core_type<tc>, window_params = [{transform_indices = @transform_0, window_bounds = array<i64: 1, 64, 8>}, {pipeline_mode = #tpu.pipeline_mode<synchronous>, transform_indices = @transform_1, window_bounds = array<i64: 8, 128>}, {pipeline_mode = #tpu.pipeline_mode<synchronous>, transform_indices = @transform_2, window_bounds = array<i64: 1, 128>}, {pipeline_mode = #tpu.pipeline_mode<synchronous>, transform_indices = @transform_3, window_bounds = array<i64: 128, 8>}, {pipeline_mode = #tpu.pipeline_mode<synchronous>, transform_indices = @transform_4, window_bounds = array<i64: 1, 8>}, {transform_indices = @transform_5, window_bounds = array<i64: 1, 8, 8>}]} {
    %c0 = arith.constant 0 : index
    %c0_0 = arith.constant 0 : index
    %c0_1 = arith.constant 0 : index
    %0 = vector.load %arg1[%c0, %c0_0, %c0_1] : memref<1x64x8xbf16, #tpu.memory_space<vmem>>, vector<1x64x8xbf16>
    %1 = vector.shape_cast %0 : vector<1x64x8xbf16> to vector<64x8xbf16>
    %c0_2 = arith.constant 0 : index
    %c0_3 = arith.constant 0 : index
    %2 = vector.load %arg2[%c0_2, %c0_3] : memref<8x128xbf16, #tpu.memory_space<vmem>>, vector<8x128xbf16>
    %cst = arith.constant dense<0.000000e+00> : vector<64x128xf32>
    %3 = tpu.matmul %1, %2, %cst {dimension_numbers = #tpu.dot_dimension_numbers<[1], [0], [0], [1], [0, 0, 1, 1], [], []>} : vector<64x8xbf16>, vector<8x128xbf16>, vector<64x128xf32> -> vector<64x128xf32>
    %c0_4 = arith.constant 0 : index
    %c0_5 = arith.constant 0 : index
    %4 = vector.load %arg3[%c0_4, %c0_5] : memref<1x128xf32, #tpu.memory_space<vmem>>, vector<1x128xf32>
    %5 = vector.broadcast %4 : vector<1x128xf32> to vector<64x128xf32>
    %6 = arith.addf %3, %5 : vector<64x128xf32>
    %7 = arith.mulf %6, %6 : vector<64x128xf32>
    %8 = arith.mulf %6, %7 : vector<64x128xf32>
    %cst_6 = arith.constant 4.471500e-02 : f32
    %9 = vector.broadcast %cst_6 : f32 to vector<64x128xf32>
    %10 = arith.mulf %9, %8 : vector<64x128xf32>
    %11 = arith.addf %6, %10 : vector<64x128xf32>
    %cst_7 = arith.constant 0.797884583 : f32
    %12 = vector.broadcast %cst_7 : f32 to vector<64x128xf32>
    %13 = arith.mulf %12, %11 : vector<64x128xf32>
    %14 = math.tanh %13 : vector<64x128xf32>
    %cst_8 = arith.constant 1.000000e+00 : f32
    %15 = vector.broadcast %cst_8 : f32 to vector<64x128xf32>
    %16 = arith.addf %15, %14 : vector<64x128xf32>
    %cst_9 = arith.constant 5.000000e-01 : f32
    %17 = vector.broadcast %cst_9 : f32 to vector<64x128xf32>
    %18 = arith.mulf %17, %16 : vector<64x128xf32>
    %19 = arith.mulf %6, %18 : vector<64x128xf32>
    %c0_10 = arith.constant 0 : index
    %c0_11 = arith.constant 0 : index
    %20 = vector.load %arg4[%c0_10, %c0_11] : memref<128x8xf32, #tpu.memory_space<vmem>>, vector<128x8xf32>
    %cst_12 = arith.constant dense<0.000000e+00> : vector<64x8xf32>
    %21 = tpu.matmul %19, %20, %cst_12 {dimension_numbers = #tpu.dot_dimension_numbers<[1], [0], [0], [1], [0, 0, 1, 1], [], []>} : vector<64x128xf32>, vector<128x8xf32>, vector<64x8xf32> -> vector<64x8xf32>
    %c0_13 = arith.constant 0 : index
    %c0_14 = arith.constant 0 : index
    %22 = vector.load %arg5[%c0_13, %c0_14] : memref<1x8xf32, #tpu.memory_space<vmem>>, vector<1x8xf32>
    %23 = vector.broadcast %22 : vector<1x8xf32> to vector<64x8xf32>
    %24 = arith.addf %21, %23 : vector<64x8xf32>
    %25 = arith.truncf %24 : vector<64x8xf32> to vector<64x8xbf16>
    %cst_15 = arith.constant dense<0.000000e+00> : vector<8x8xf32>
    %26 = tpu.matmul %25, %1, %cst_15 {dimension_numbers = #tpu.dot_dimension_numbers<[0], [0], [1], [1], [0, 1, 1, 1], [], []>} : vector<64x8xbf16>, vector<64x8xbf16>, vector<8x8xf32> -> vector<8x8xf32>
    %cst_16 = arith.constant 1.562500e-02 : f32
    %27 = vector.broadcast %cst_16 : f32 to vector<8x8xf32>
    %28 = arith.mulf %26, %27 : vector<8x8xf32>
    %c0_17 = arith.constant 0 : index
    %c0_18 = arith.constant 0 : index
    %c0_19 = arith.constant 0 : index
    %29 = vector.load %arg6[%c0_17, %c0_18, %c0_19] : memref<1x8x8xf32, #tpu.memory_space<vmem>>, vector<1x8x8xf32>
    %30 = vector.shape_cast %29 : vector<1x8x8xf32> to vector<8x8xf32>
    %31 = vector.shape_cast %28 : vector<8x8xf32> to vector<1x8x8xf32>
    tpu.vector_store %arg6[%c0_17, %c0_18, %c0_19], %31 {strides = array<i32>} : memref<1x8x8xf32, #tpu.memory_space<vmem>>, vector<1x8x8xf32>,
    return
  }
  func.func @transform_0(%arg0: i32) -> (i32, i32, i32) {
    %c0_i32 = arith.constant 0 : i32
    %c0_i32_0 = arith.constant 0 : i32
    %c0_i32_1 = arith.constant 0 : i32
    return %arg0, %c0_i32, %c0_i32_0 : i32, i32, i32
  }
  func.func @transform_1(%arg0: i32) -> (i32, i32) {
    %c0_i32 = arith.constant 0 : i32
    %c0_i32_0 = arith.constant 0 : i32
    %c0_i32_1 = arith.constant 0 : i32
    return %c0_i32, %c0_i32_0 : i32, i32
  }
  func.func @transform_2(%arg0: i32) -> (i32, i32) {
    %c0_i32 = arith.constant 0 : i32
    %c0_i32_0 = arith.constant 0 : i32
    %c0_i32_1 = arith.constant 0 : i32
    return %c0_i32, %c0_i32_0 : i32, i32
  }
  func.func @transform_3(%arg0: i32) -> (i32, i32) {
    %c0_i32 = arith.constant 0 : i32
    %c0_i32_0 = arith.constant 0 : i32
    %c0_i32_1 = arith.constant 0 : i32
    return %c0_i32, %c0_i32_0 : i32, i32
  }
  func.func @transform_4(%arg0: i32) -> (i32, i32) {
    %c0_i32 = arith.constant 0 : i32
    %c0_i32_0 = arith.constant 0 : i32
    %c0_i32_1 = arith.constant 0 : i32
    return %c0_i32, %c0_i32_0 : i32, i32
  }
  func.func @transform_5(%arg0: i32) -> (i32, i32, i32) {
    %c0_i32 = arith.constant 0 : i32
    %c0_i32_0 = arith.constant 0 : i32
    %c0_i32_1 = arith.constant 0 : i32
    return %arg0, %c0_i32, %c0_i32_0 : i32, i32, i32
  }
}

</mosaic_0001>

<llo_original>
// kernel: tpu_custom_call.1
$region0: #{tpu_custom_call.1}
  #allocation0 [shape = 'u32[]', space=smem, size = 0x4, offset = 0x4, fixed_abs, tag = 'smem constant byte address 0x4 - core index']
  #allocation1 [shape = 'u32[144,128]{1,0:T(1,128)}', space=vmem, size = 0x12000, scoped, tag = 'internal scratch']
  %s0 = inlined_call_operand.vmem [shape: bf16[2,64,8], index: 0, kind: input, shape index: {}]
  %s1 = inlined_call_operand.vmem [shape: bf16[8,128], index: 1, kind: input, shape index: {}]
  %s2 = inlined_call_operand.vmem [shape: f32[1,128], index: 2, kind: input, shape index: {}]
  %s3 = inlined_call_operand.vmem [shape: f32[128,8], index: 3, kind: input, shape index: {}]
  %s4 = inlined_call_operand.vmem [shape: f32[1,8], index: 4, kind: input, shape index: {}]
  %s5 = inlined_call_operand.hbm [shape: f32[2,8,8], index: 5, kind: output, shape index: {}]
  %s6 = sld [smem:[#allocation0]]
  $region53: #{tpu_custom_call.1} parent=0
    _
  %s8 = ssub.s32 1, %s6
  %s9 = scalar_select 0, %s8, %s6
  $region1: #{tpu_custom_call.1} parent=0
    #allocation2 [shape = 'u8[8192]{0}', space=vmem, size = 0x2000, scoped, tag = 'output window, operand 0']
    #allocation3 [shape = 's32[2]{0}', space=sflag, size = 0x8, scoped, tag = 'scoped memory for tpu_custom_call.1']
    %10 = vsyncpa [#allocation3], 0
    %s11 = scalar_lea.sflag [#allocation3], 1
    %12 = vsyncpa %s11, 0
    loop: start=0, step=1, limit=4
    $region2: #{tpu_custom_call.1} parent=1 // loop_pre_header
      _
    $region3: #{tpu_custom_call.1} parent=1 // loop_header
      %s14 = sphi 0, %s18
      %p15 = scmp.ge.s32.totalorder %s14, 4
      %s24 = sphi 0, %s26
      %s27 = sphi 0, %s24
      %s28 = sphi 0, %s27
      %s44 = sphi 0, %s28
      %s48 = sphi 0, %s48
      %s50 = sphi 0, %s48
      %s51 = sphi 0, %s50
      %s65 = sphi 0, %s51
      %s69 = sphi 0, %s69
      %s71 = sphi 0, %s69
      %s72 = sphi 0, %s71
      %s86 = sphi 0, %s72
      %s90 = sphi 0, %s90
      %s92 = sphi 0, %s90
      %s93 = sphi 0, %s92
      %s107 = sphi 0, %s93
      %s111 = sphi 0, %s111
      %s113 = sphi 0, %s111
      %s114 = sphi 0, %s113
      %s128 = sphi 0, %s114
      %s134 = sphi 0, %s136
      %s137 = sphi 0, %s134
      %s138 = sphi 0, %s137
      %s154 = sphi 0, %s138
    $region4: #{tpu_custom_call.1} parent=1 // loop_header_branch
      %17 = sbr.rel (%p15) target = $region8
    $region5: #{tpu_custom_call.1} parent=1 // loop_body
      %s19 = ssub.s32 %s14, 1
      %s20 = ssub.s32 %s14, 2
      %s21 = sadd.s32 %s14, 1
      %s22 = ssub.s32 %s14, %s21
      %p23 = scmp.eq.s32.totalorder %s22, 0
      %s25 = sadd.s32 %s24, 1
      %s26 = scalar_select %p23, %s24, %s25
      %p29 = pneg %p23
      %p30 = scmp.eq.s32.totalorder %s14, 1
      %p31 = por %p29, %p30
      %p32 = scmp.ne.s32.totalorder %s24, %s27
      %p33 = scmp.eq.s32.totalorder %s14, 0
      %p34 = por %p32, %p33
      %p35 = scmp.ne.s32.totalorder %s24, %s27
      %p36 = scmp.eq.s32.totalorder %s19, 1
      %p37 = por %p35, %p36
      %p38 = scmp.ne.s32.totalorder %s27, %s28
      %p39 = scmp.eq.s32.totalorder %s19, 0
      %p40 = por %p38, %p39
      %p41 = scmp.ne.s32.totalorder %s27, %s28
      %p42 = scmp.eq.s32.totalorder %s20, 1
      %p43 = por %p41, %p42
      %p45 = scmp.ne.s32.totalorder %s28, %s44
      %p46 = scmp.eq.s32.totalorder %s20, 0
      %p47 = por %p45, %p46
      %s49 = sadd.s32 %s48, 1
      %p52 = scmp.eq.s32.totalorder %s14, 1
      %p53 = scmp.ne.s32.totalorder %s48, %s50
      %p54 = scmp.eq.s32.totalorder %s14, 0
      %p55 = por %p53, %p54
      %p56 = scmp.ne.s32.totalorder %s48, %s50
      %p57 = scmp.eq.s32.totalorder %s19, 1
      %p58 = por %p56, %p57
      %p59 = scmp.ne.s32.totalorder %s50, %s51
      %p60 = scmp.eq.s32.totalorder %s19, 0
      %p61 = por %p59, %p60
      %p62 = scmp.ne.s32.totalorder %s50, %s51
      %p63 = scmp.eq.s32.totalorder %s20, 1
      %p64 = por %p62, %p63
      %p66 = scmp.ne.s32.totalorder %s51, %s65
      %p67 = scmp.eq.s32.totalorder %s20, 0
      %p68 = por %p66, %p67
      %s70 = sadd.s32 %s69, 1
      %p73 = scmp.eq.s32.totalorder %s14, 1
      %p74 = scmp.ne.s32.totalorder %s69, %s71
      %p75 = scmp.eq.s32.totalorder %s14, 0
      %p76 = por %p74, %p75
      %p77 = scmp.ne.s32.totalorder %s69, %s71
      %p78 = scmp.eq.s32.totalorder %s19, 1
      %p79 = por %p77, %p78
      %p80 = scmp.ne.s32.totalorder %s71, %s72
      %p81 = scmp.eq.s32.totalorder %s19, 0
      %p82 = por %p80, %p81
      %p83 = scmp.ne.s32.totalorder %s71, %s72
      %p84 = scmp.eq.s32.totalorder %s20, 1
      %p85 = por %p83, %p84
      %p87 = scmp.ne.s32.totalorder %s72, %s86
      %p88 = scmp.eq.s32.totalorder %s20, 0
      %p89 = por %p87, %p88
      %s91 = sadd.s32 %s90, 1
      %p94 = scmp.eq.s32.totalorder %s14, 1
      %p95 = scmp.ne.s32.totalorder %s90, %s92
      %p96 = scmp.eq.s32.totalorder %s14, 0
      %p97 = por %p95, %p96
      %p98 = scmp.ne.s32.totalorder %s90, %s92
      %p99 = scmp.eq.s32.totalorder %s19, 1
      %p100 = por %p98, %p99
      %p101 = scmp.ne.s32.totalorder %s92, %s93
      %p102 = scmp.eq.s32.totalorder %s19, 0
      %p103 = por %p101, %p102
      %p104 = scmp.ne.s32.totalorder %s92, %s93
      %p105 = scmp.eq.s32.totalorder %s20, 1
      %p106 = por %p104, %p105
      %p108 = scmp.ne.s32.totalorder %s93, %s107
      %p109 = scmp.eq.s32.totalorder %s20, 0
      %p110 = por %p108, %p109
      %s112 = sadd.s32 %s111, 1
      %p115 = scmp.eq.s32.totalorder %s14, 1
      %p116 = scmp.ne.s32.totalorder %s111, %s113
      %p117 = scmp.eq.s32.totalorder %s14, 0
      %p118 = por %p116, %p117
      %p119 = scmp.ne.s32.totalorder %s111, %s113
      %p120 = scmp.eq.s32.totalorder %s19, 1
      %p121 = por %p119, %p120
      %p122 = scmp.ne.s32.totalorder %s113, %s114
      %p123 = scmp.eq.s32.totalorder %s19, 0
      %p124 = por %p122, %p123
      %p125 = scmp.ne.s32.totalorder %s113, %s114
      %p126 = scmp.eq.s32.totalorder %s20, 1
      %p127 = por %p125, %p126
      %p129 = scmp.ne.s32.totalorder %s114, %s128
      %p130 = scmp.eq.s32.totalorder %s20, 0
      %p131 = por %p129, %p130
      %s132 = ssub.s32 %s14, %s21
      %p133 = scmp.eq.s32.totalorder %s132, 0
      %s135 = sadd.s32 %s134, 1
      %s136 = scalar_select %p133, %s134, %s135
      %p139 = pneg %p133
      %p140 = scmp.eq.s32.totalorder %s14, 1
      %p141 = por %p139, %p140
      %p142 = scmp.ne.s32.totalorder %s134, %s137
      %p143 = scmp.eq.s32.totalorder %s14, 0
      %p144 = por %p142, %p143
      %p145 = scmp.ne.s32.totalorder %s134, %s137
      %p146 = scmp.eq.s32.totalorder %s19, 1
      %p147 = por %p145, %p146
      %p148 = scmp.ne.s32.totalorder %s137, %s138
      %p149 = scmp.eq.s32.totalorder %s19, 0
      %p150 = por %p148, %p149
      %p151 = scmp.ne.s32.totalorder %s137, %s138
      %p152 = scmp.eq.s32.totalorder %s20, 1
      %p153 = por %p151, %p152
      %p155 = scmp.ne.s32.totalorder %s138, %s154
      %p156 = scmp.eq.s32.totalorder %s20, 0
      %p157 = por %p155, %p156
      %p158 = scmp.le.s32.totalorder 1, %s14
      %p159 = scmp.lt.s32.totalorder %s14, 3
      %p160 = pnand %p158, %p159
      %p161 = pneg %p160
      // Predicated region
      $region9: #{tpu_custom_call.1} parent=5 // pred_check
        _
      $region10: #{tpu_custom_call.1} parent=5 // pred_check_branch
        %163 = sbr.rel (%p160) target = $region12
      $region11: #{tpu_custom_call.1} parent=5 // pred_region
        %s164 = ssub.s32 %s14, 1
        // Predicated region
        $region13: #{tpu_custom_call.1} parent=11 // pred_check
          %p165 = pneg %p61
        $region14: #{tpu_custom_call.1} parent=11 // pred_check_branch
          %167 = sbr.rel (%p165) target = $region16
        $region15: #{tpu_custom_call.1} parent=11 // pred_region
          _
        $region16: #{tpu_custom_call.1} parent=11 // pred_fallthru
          _
        // Predicated region
        $region17: #{tpu_custom_call.1} parent=11 // pred_check
          %p168 = pneg %p82
        $region18: #{tpu_custom_call.1} parent=11 // pred_check_branch
          %170 = sbr.rel (%p168) target = $region20
        $region19: #{tpu_custom_call.1} parent=11 // pred_region
          _
        $region20: #{tpu_custom_call.1} parent=11 // pred_fallthru
          _
        // Predicated region
        $region21: #{tpu_custom_call.1} parent=11 // pred_check
          %p171 = pneg %p103
        $region22: #{tpu_custom_call.1} parent=11 // pred_check_branch
          %173 = sbr.rel (%p171) target = $region24
        $region23: #{tpu_custom_call.1} parent=11 // pred_region
          _
        $region24: #{tpu_custom_call.1} parent=11 // pred_fallthru
          _
        // Predicated region
        $region25: #{tpu_custom_call.1} parent=11 // pred_check
          %p174 = pneg %p124
        $region26: #{tpu_custom_call.1} parent=11 // pred_check_branch
          %176 = sbr.rel (%p174) target = $region28
        $region27: #{tpu_custom_call.1} parent=11 // pred_region
          _
        $region28: #{tpu_custom_call.1} parent=11 // pred_fallthru
          _
      $region12: #{tpu_custom_call.1} parent=5 // pred_fallthru
        _
      %p177 = scmp.lt.s32.totalorder %s14, 2
      // Predicated region
      $region29: #{tpu_custom_call.1} parent=5 // pred_check
        %p178 = pneg %p177
      $region30: #{tpu_custom_call.1} parent=5 // pred_check_branch
        %180 = sbr.rel (%p178) target = $region32
      $region31: #{tpu_custom_call.1} parent=5 // pred_region
        // Predicated region
        $region33: #{tpu_custom_call.1} parent=31 // pred_check
          %p181 = pneg %p34
        $region34: #{tpu_custom_call.1} parent=31 // pred_check_branch
          %183 = sbr.rel (%p181) target = $region36
        $region35: #{tpu_custom_call.1} parent=31 // pred_region
          %p184 = scmp.lt.s32.totalorder %s14, 1
          %s185 = scalar_select %p184, %s14, 1
          %s186 = smul.addr %s185, 8
          %s187 = smul.addr %s186, 4
          %s188 = scalar_lea.vmem %s0, %s187
        $region36: #{tpu_custom_call.1} parent=31 // pred_fallthru
          _
      $region32: #{tpu_custom_call.1} parent=5 // pred_fallthru
        _
      %p189 = scmp.le.s32.totalorder 1, %s14
      %p190 = scmp.lt.s32.totalorder %s14, 3
      %p191 = pnand %p189, %p190
      %p192 = pneg %p191
      // Predicated region
      $region37: #{tpu_custom_call.1} parent=5 // pred_check
        _
      $region38: #{tpu_custom_call.1} parent=5 // pred_check_branch
        %194 = sbr.rel (%p191) target = $region40
      $region39: #{tpu_custom_call.1} parent=5 // pred_region
        %s195 = ssub.s32 %s14, 1
        %p196 = scmp.lt.s32.totalorder %s19, 1
        %s197 = scalar_select %p196, %s19, 1
        %s198 = smul.addr %s197, 8
        %s199 = smul.addr %s198, 4
        %s200 = scalar_lea.vmem %s0, %s199
        %p201 = pneg %p40
        %p202 = pneg %p37
        %p203 = pneg %p61
        %p204 = pneg %p58
        %p205 = pneg %p82
        %p206 = pneg %p79
        %p207 = pneg %p103
        %p208 = pneg %p100
        %p209 = pneg %p124
        %p210 = pneg %p121
        %p211 = pneg %p150
        %p212 = pneg %p147
        %s213 = sand.u32 %s137, 1
        %s214 = scalar_lea.sflag [#allocation3], %s213
        %s215 = sand.u32 %s137, 1
        %s216 = smul.addr %s215, 8
        %s217 = scalar_lea.vmem [#allocation2], %s216
        %p218 = scmp.lt.s32.totalorder %s19, 1
        %s219 = scalar_select %p218, %s19, 1
        %s220 = smul.addr %s219, 8
        %s221 = smul.addr %s220, 4
        %s222 = scalar_lea.vmem %s0, %s221
        %v224 = vld [vmem:[%s222] sm:$0xf]
        %v225 = vld [vmem:[%s222 + $0x4] sm:$0xf]
        %v226 = vld [vmem:[%s222 + $0x8] sm:$0xf]
        %v227 = vld [vmem:[%s222 + $0xc] sm:$0xf]
        %v228 = vld [vmem:[%s222 + $0x10] sm:$0xf]
        %v229 = vld [vmem:[%s222 + $0x14] sm:$0xf]
        %v230 = vld [vmem:[%s222 + $0x18] sm:$0xf]
        %v231 = vld [vmem:[%s222 + $0x1c] sm:$0xf]
        %v232 = vld [vmem:[%s1] sm:$0xf]
        %v233 = vld [vmem:[%s2] sm:$0x1]
        %v235 = vlaneseq
        %v236 = vshrl.u32 %v235, 7
        %v237 = vsub.s32 0, %v236
        %v238 = vrot.slane %v233, %v237
        %v248 = vunpack.c.l.b16 %v224
        %v249 = vunpack.c.l.b16 %v225
        %v250 = vunpack.c.l.b16 %v226
        %v251 = vunpack.c.l.b16 %v227
        %v252 = vunpack.c.l.b16 %v228
        %v253 = vunpack.c.l.b16 %v229
        %v254 = vunpack.c.l.b16 %v230
        %v255 = vunpack.c.l.b16 %v231
        %v256 = vpack.c.b16 %v249, %v248
        %v257 = vpack.c.b16 %v251, %v250
        %v258 = vpack.c.b16 %v253, %v252
        %v259 = vpack.c.b16 %v255, %v254
        %vm260 = vcmask 64512
        %v262 = vsel %vm260, %v256, 0
        %v265 = vsel %vm260, %v257, 0
        %v268 = vsel %vm260, %v258, 0
        %v271 = vsel %vm260, %v259, 0
        %vm273 = vcmask 1043456
        %v275 = vsel %vm273, %v232, 0
        %277 = vmatprep.subr.bf16.mxu0 0
        %278 = vmatpush1.bf16.msra.mxu0 %v275
        %279 = vmatprep.subr.bf16.mxu0 0
        %280 = vmatpush1.bf16.msra.mxu0 0
        %281 = vmatprep.subr.bf16.mxu0 0
        %282 = vmatpush1.bf16.msra.mxu0 0
        %283 = vmatprep.subr.bf16.mxu0 0
        %284 = vmatpush1.bf16.msra.mxu0 0
        %285 = vmatprep.subr.bf16.mxu0 0
        %286 = vmatpush1.bf16.msra.mxu0 0
        %287 = vmatprep.subr.bf16.mxu0 0
        %288 = vmatpush1.bf16.msra.mxu0 0
        %289 = vmatprep.subr.bf16.mxu0 0
        %290 = vmatpush1.bf16.msra.mxu0 0
        %291 = vmatprep.subr.bf16.mxu0 0
        %292 = vmatpush1.bf16.msra.mxu0 0
        %293 = vmatprep.subr.bf16.mxu0 0
        %294 = vmatpush1.bf16.msra.mxu0 0
        %295 = vmatprep.subr.bf16.mxu0 0
        %296 = vmatpush1.bf16.msra.mxu0 0
        %297 = vmatprep.subr.bf16.mxu0 0
        %298 = vmatpush1.bf16.msra.mxu0 0
        %299 = vmatprep.subr.bf16.mxu0 0
        %300 = vmatpush1.bf16.msra.mxu0 0
        %301 = vmatprep.subr.bf16.mxu0 0
        %302 = vmatpush1.bf16.msra.mxu0 0
        %303 = vmatprep.subr.bf16.mxu0 0
        %304 = vmatpush1.bf16.msra.mxu0 0
        %305 = vmatprep.subr.bf16.mxu0 0
        %306 = vmatpush1.bf16.msra.mxu0 0
        %307 = vmatprep.subr.bf16.mxu0 0
        %308 = vmatpush1.bf16.msra.mxu0 0
        %309 = vmatprep.mubr.bf16.mxu0 0
        %310 = vmatmul.mubr.bf16.gmra.mrb[0].mxu0 %v262
        %v311 = vpop.f32.mrb[0].mxu0
        %v312 = vadd.f32 %v238, %v311
        %v313 = vpop.f32.mrb[0].mxu0
        %v314 = vpop.f32.mrb[0].mxu0
        %v315 = vadd.f32 %v238, %v314
        %v316 = vpop.f32.mrb[0].mxu0
        %317 = vmatprep.mubr.bf16.mxu0 0
        %318 = vmatmul.mubr.bf16.gmra.mrb[0].mxu0 %v265
        %v319 = vpop.f32.mrb[0].mxu0
        %v320 = vadd.f32 %v238, %v319
        %v321 = vpop.f32.mrb[0].mxu0
        %v322 = vpop.f32.mrb[0].mxu0
        %v323 = vadd.f32 %v238, %v322
        %v324 = vpop.f32.mrb[0].mxu0
        %325 = vmatprep.mubr.bf16.mxu0 0
        %326 = vmatmul.mubr.bf16.gmra.mrb[0].mxu0 %v268
        %v327 = vpop.f32.mrb[0].mxu0
        %v328 = vadd.f32 %v238, %v327
        %v329 = vpop.f32.mrb[0].mxu0
        %v330 = vpop.f32.mrb[0].mxu0
        %v331 = vadd.f32 %v238, %v330
        %v332 = vpop.f32.mrb[0].mxu0
        %333 = vmatprep.mubr.bf16.mxu0 0
        %334 = vmatmul.mubr.bf16.gmra.mrb[0].mxu0 %v271
        %v335 = vpop.f32.mrb[0].mxu0
        %v336 = vadd.f32 %v238, %v335
        %v337 = vpop.f32.mrb[0].mxu0
        %v338 = vpop.f32.mrb[0].mxu0
        %v339 = vadd.f32 %v238, %v338
        %v340 = vpop.f32.mrb[0].mxu0
        %341 = vdwg.mxu0
        %v342 = vmul.f32 %v312, %v312
        %v343 = vmul.f32 %v315, %v315
        %v344 = vmul.f32 %v320, %v320
        %v345 = vmul.f32 %v323, %v323
        %v346 = vmul.f32 %v328, %v328
        %v347 = vmul.f32 %v331, %v331
        %v348 = vmul.f32 %v336, %v336
        %v349 = vmul.f32 %v339, %v339
        %v350 = vmul.f32 %v312, %v342
        %v351 = vmul.f32 %v315, %v343
        %v352 = vmul.f32 %v320, %v344
        %v353 = vmul.f32 %v323, %v345
        %v354 = vmul.f32 %v328, %v346
        %v355 = vmul.f32 %v331, %v347
        %v356 = vmul.f32 %v336, %v348
        %v357 = vmul.f32 %v339, %v349
        %v358 = vmul.f32 %v350, 0.044715
        %v359 = vmul.f32 %v351, 0.044715
        %v360 = vmul.f32 %v352, 0.044715
        %v361 = vmul.f32 %v353, 0.044715
        %v362 = vmul.f32 %v354, 0.044715
        %v363 = vmul.f32 %v355, 0.044715
        %v364 = vmul.f32 %v356, 0.044715
        %v365 = vmul.f32 %v357, 0.044715
        %v366 = vadd.f32 %v312, %v358
        %v367 = vadd.f32 %v315, %v359
        %v368 = vadd.f32 %v320, %v360
        %v369 = vadd.f32 %v323, %v361
        %v370 = vadd.f32 %v328, %v362
        %v371 = vadd.f32 %v331, %v363
        %v372 = vadd.f32 %v336, %v364
        %v373 = vadd.f32 %v339, %v365
        %v374 = vmul.f32 %v366, 0.7978846
        %v375 = vmul.f32 %v367, 0.7978846
        %v376 = vmul.f32 %v368, 0.7978846
        %v377 = vmul.f32 %v369, 0.7978846
        %v378 = vmul.f32 %v370, 0.7978846
        %v379 = vmul.f32 %v371, 0.7978846
        %v380 = vmul.f32 %v372, 0.7978846
        %v381 = vmul.f32 %v373, 0.7978846
        %v382 = vtanh.pop %v374
        %v383 = vtanh.pop %v375
        %v384 = vtanh.pop %v376
        %v385 = vtanh.pop %v377
        %v386 = vtanh.pop %v378
        %v387 = vtanh.pop %v379
        %v388 = vtanh.pop %v380
        %v389 = vtanh.pop %v381
        %v390 = vadd.f32 %v382, 1.0
        %v391 = vadd.f32 %v383, 1.0
        %v392 = vadd.f32 %v384, 1.0
        %v393 = vadd.f32 %v385, 1.0
        %v394 = vadd.f32 %v386, 1.0
        %v395 = vadd.f32 %v387, 1.0
        %v396 = vadd.f32 %v388, 1.0
        %v397 = vadd.f32 %v389, 1.0
        %v398 = vmul.f32 %v390, 0.5
        %v399 = vmul.f32 %v391, 0.5
        %v400 = vmul.f32 %v392, 0.5
        %v401 = vmul.f32 %v393, 0.5
        %v402 = vmul.f32 %v394, 0.5
        %v403 = vmul.f32 %v395, 0.5
        %v404 = vmul.f32 %v396, 0.5
        %v405 = vmul.f32 %v397, 0.5
        %v406 = vmul.f32 %v312, %v398
        %v407 = vmul.f32 %v315, %v399
        %v408 = vmul.f32 %v320, %v400
        %v409 = vmul.f32 %v323, %v401
        %v410 = vmul.f32 %v328, %v402
        %v411 = vmul.f32 %v331, %v403
        %v412 = vmul.f32 %v336, %v404
        %v413 = vmul.f32 %v339, %v405
        %v414 = vld [vmem:[%s3] sm:$0xff]
        %v415 = vld [vmem:[%s3 + $0x8] sm:$0xff]
        %v416 = vld [vmem:[%s3 + $0x10] sm:$0xff]
        %v417 = vld [vmem:[%s3 + $0x18] sm:$0xff]
        %v418 = vld [vmem:[%s3 + $0x20] sm:$0xff]
        %v419 = vld [vmem:[%s3 + $0x28] sm:$0xff]
        %v420 = vld [vmem:[%s3 + $0x30] sm:$0xff]
        %v421 = vld [vmem:[%s3 + $0x38] sm:$0xff]
        %v422 = vld [vmem:[%s3 + $0x40] sm:$0xff]
        %v423 = vld [vmem:[%s3 + $0x48] sm:$0xff]
        %v424 = vld [vmem:[%s3 + $0x50] sm:$0xff]
        %v425 = vld [vmem:[%s3 + $0x58] sm:$0xff]
        %v426 = vld [vmem:[%s3 + $0x60] sm:$0xff]
        %v427 = vld [vmem:[%s3 + $0x68] sm:$0xff]
        %v428 = vld [vmem:[%s3 + $0x70] sm:$0xff]
        %v429 = vld [vmem:[%s3 + $0x78] sm:$0xff]
        %v430 = vld [vmem:[%s4] sm:$0x1]
        %v432 = vlaneseq
        %v433 = vshrl.u32 %v432, 7
        %v434 = vsub.s32 0, %v433
        %v435 = vrot.slane %v430, %v434
        %437 = vmatprep.subr.mxu0 0.0
        %438 = vmatpush1.msra.mxu0 %v414
        %439 = vmatprep.subr.mxu0 0.0
        %440 = vmatpush1.msra.mxu0 %v415
        %441 = vmatprep.subr.mxu0 0.0
        %442 = vmatpush1.msra.mxu0 %v416
        %443 = vmatprep.subr.mxu0 0.0
        %444 = vmatpush1.msra.mxu0 %v417
        %445 = vmatprep.subr.mxu0 0.0
        %446 = vmatpush1.msra.mxu0 %v418
        %447 = vmatprep.subr.mxu0 0.0
        %448 = vmatpush1.msra.mxu0 %v419
        %449 = vmatprep.subr.mxu0 0.0
        %450 = vmatpush1.msra.mxu0 %v420
        %451 = vmatprep.subr.mxu0 0.0
        %452 = vmatpush1.msra.mxu0 %v421
        %453 = vmatprep.subr.mxu0 0.0
        %454 = vmatpush1.msra.mxu0 %v422
        %455 = vmatprep.subr.mxu0 0.0
        %456 = vmatpush1.msra.mxu0 %v423
        %457 = vmatprep.subr.mxu0 0.0
        %458 = vmatpush1.msra.mxu0 %v424
        %459 = vmatprep.subr.mxu0 0.0
        %460 = vmatpush1.msra.mxu0 %v425
        %461 = vmatprep.subr.mxu0 0.0
        %462 = vmatpush1.msra.mxu0 %v426
        %463 = vmatprep.subr.mxu0 0.0
        %464 = vmatpush1.msra.mxu0 %v427
        %465 = vmatprep.subr.mxu0 0.0
        %466 = vmatpush1.msra.mxu0 %v428
        %467 = vmatprep.subr.mxu0 0.0
        %468 = vmatpush1.msra.mxu0 %v429
        %469 = vmatprep.subr.mxu0 0.0
        %470 = vmatpush1.msra.mxu0 0.0
        %471 = vmatprep.subr.mxu0 0.0
        %472 = vmatpush1.msra.mxu0 0.0
        %473 = vmatprep.subr.mxu0 0.0
        %474 = vmatpush1.msra.mxu0 0.0
        %475 = vmatprep.subr.mxu0 0.0
        %476 = vmatpush1.msra.mxu0 0.0
        %477 = vmatprep.subr.mxu0 0.0
        %478 = vmatpush1.msra.mxu0 0.0
        %479 = vmatprep.subr.mxu0 0.0
        %480 = vmatpush1.msra.mxu0 0.0
        %481 = vmatprep.subr.mxu0 0.0
        %482 = vmatpush1.msra.mxu0 0.0
        %483 = vmatprep.subr.mxu0 0.0
        %484 = vmatpush1.msra.mxu0 0.0
        %485 = vmatprep.subr.mxu0 0.0
        %486 = vmatpush1.msra.mxu0 0.0
        %487 = vmatprep.subr.mxu0 0.0
        %488 = vmatpush1.msra.mxu0 0.0
        %489 = vmatprep.subr.mxu0 0.0
        %490 = vmatpush1.msra.mxu0 0.0
        %491 = vmatprep.subr.mxu0 0.0
        %492 = vmatpush1.msra.mxu0 0.0
        %493 = vmatprep.subr.mxu0 0.0
        %494 = vmatpush1.msra.mxu0 0.0
        %495 = vmatprep.subr.mxu0 0.0
        %496 = vmatpush1.msra.mxu0 0.0
        %497 = vmatprep.subr.mxu0 0.0
        %498 = vmatpush1.msra.mxu0 0.0
        %499 = vmatprep.subr.mxu0 0.0
        %500 = vmatpush1.msra.mxu0 0.0
        %501 = vmatprep.mubr.f32.mxu0 0.0
        %502 = vmatmul.mubr.f32.gmra.mrb[0].mxu0 %v406
        %v503 = vpop.f32.mrb[0].mxu0
        %v504 = vadd.f32 %v435, %v503
        %v505 = vpop.f32.mrb[0].mxu0
        %506 = vmatprep.mubr.f32.mxu0 0.0
        %507 = vmatmul.mubr.f32.gmra.mrb[0].mxu0 %v407
        %v508 = vpop.f32.mrb[0].mxu0
        %v509 = vadd.f32 %v435, %v508
        %v510 = vpop.f32.mrb[0].mxu0
        %511 = vmatprep.mubr.f32.mxu0 0.0
        %512 = vmatmul.mubr.f32.gmra.mrb[0].mxu0 %v408
        %v513 = vpop.f32.mrb[0].mxu0
        %v514 = vadd.f32 %v435, %v513
        %v515 = vpop.f32.mrb[0].mxu0
        %516 = vmatprep.mubr.f32.mxu0 0.0
        %517 = vmatmul.mubr.f32.gmra.mrb[0].mxu0 %v409
        %v518 = vpop.f32.mrb[0].mxu0
        %v519 = vadd.f32 %v435, %v518
        %v520 = vpop.f32.mrb[0].mxu0
        %521 = vmatprep.mubr.f32.mxu0 0.0
        %522 = vmatmul.mubr.f32.gmra.mrb[0].mxu0 %v410
        %v523 = vpop.f32.mrb[0].mxu0
        %v524 = vadd.f32 %v435, %v523
        %v525 = vpop.f32.mrb[0].mxu0
        %526 = vmatprep.mubr.f32.mxu0 0.0
        %527 = vmatmul.mubr.f32.gmra.mrb[0].mxu0 %v411
        %v528 = vpop.f32.mrb[0].mxu0
        %v529 = vadd.f32 %v435, %v528
        %v530 = vpop.f32.mrb[0].mxu0
        %531 = vmatprep.mubr.f32.mxu0 0.0
        %532 = vmatmul.mubr.f32.gmra.mrb[0].mxu0 %v412
        %v533 = vpop.f32.mrb[0].mxu0
        %v534 = vadd.f32 %v435, %v533
        %v535 = vpop.f32.mrb[0].mxu0
        %536 = vmatprep.mubr.f32.mxu0 0.0
        %537 = vmatmul.mubr.f32.gmra.mrb[0].mxu0 %v413
        %v538 = vpop.f32.mrb[0].mxu0
        %v539 = vadd.f32 %v435, %v538
        %v540 = vpop.f32.mrb[0].mxu0
        %541 = vdwg.mxu0
        %v542 = vpack.c.bf16 %v509, %v504
        %v543 = vpack.c.bf16 %v519, %v514
        %v544 = vpack.c.bf16 %v529, %v524
        %v545 = vpack.c.bf16 %v539, %v534
        %546 = vxpose.xlu0.c.b16.start [1/8] %v542, 128
        %547 = vxpose.xlu0.c.b16.cont [2/8] %v543, 128
        %548 = vxpose.xlu0.c.b16.cont [3/8] %v544, 128
        %549 = vxpose.xlu0.c.b16.cont [4/8] %v545, 128
        %550 = vxpose.xlu0.c.b16.cont [5/8] 0, 128
        %551 = vxpose.xlu0.c.b16.cont [6/8] 0, 128
        %552 = vxpose.xlu0.c.b16.cont [7/8] 0, 128
        %553 = vxpose.xlu0.c.b16.end [8/8] 0, 128
        %v554 = vpop.trf.xlu0
        %v555 = vpop.trf.xlu0
        %v556 = vpop.trf.xlu0
        %v557 = vpop.trf.xlu0
        %v558 = vpop.trf.xlu0
        %v559 = vpop.trf.xlu0
        %v560 = vpop.trf.xlu0
        %v561 = vpop.trf.xlu0
        %vm566 = vcmask 523264
        %v568 = vsel %vm566, %v554, 0
        %570 = vmatprep.subr.bf16.mxu0 0
        %571 = vmatpush1.bf16.msra.mxu0 %v256
        %572 = vmatprep.subr.bf16.mxu0 0
        %573 = vmatpush1.bf16.msra.mxu0 %v257
        %574 = vmatprep.subr.bf16.mxu0 0
        %575 = vmatpush1.bf16.msra.mxu0 %v258
        %576 = vmatprep.subr.bf16.mxu0 0
        %577 = vmatpush1.bf16.msra.mxu0 %v259
        %578 = vmatprep.subr.bf16.mxu0 0
        %579 = vmatpush1.bf16.msra.mxu0 0
        %580 = vmatprep.subr.bf16.mxu0 0
        %581 = vmatpush1.bf16.msra.mxu0 0
        %582 = vmatprep.subr.bf16.mxu0 0
        %583 = vmatpush1.bf16.msra.mxu0 0
        %584 = vmatprep.subr.bf16.mxu0 0
        %585 = vmatpush1.bf16.msra.mxu0 0
        %586 = vmatprep.subr.bf16.mxu0 0
        %587 = vmatpush1.bf16.msra.mxu0 0
        %588 = vmatprep.subr.bf16.mxu0 0
        %589 = vmatpush1.bf16.msra.mxu0 0
        %590 = vmatprep.subr.bf16.mxu0 0
        %591 = vmatpush1.bf16.msra.mxu0 0
        %592 = vmatprep.subr.bf16.mxu0 0
        %593 = vmatpush1.bf16.msra.mxu0 0
        %594 = vmatprep.subr.bf16.mxu0 0
        %595 = vmatpush1.bf16.msra.mxu0 0
        %596 = vmatprep.subr.bf16.mxu0 0
        %597 = vmatpush1.bf16.msra.mxu0 0
        %598 = vmatprep.subr.bf16.mxu0 0
        %599 = vmatpush1.bf16.msra.mxu0 0
        %600 = vmatprep.subr.bf16.mxu0 0
        %601 = vmatpush1.bf16.msra.mxu0 0
        %602 = vmatprep.mubr.bf16.mxu0 0
        %603 = vmatmul.mubr.bf16.gmra.mrb[0].mxu0 %v568
        %v604 = vpop.f32.mrb[0].mxu0
        %v605 = vadd.f32 0.0, %v604
        %v606 = vpop.f32.mrb[0].mxu0
        %v607 = vpop.f32.mrb[0].mxu0
        %v608 = vpop.f32.mrb[0].mxu0
        %609 = vdwg.mxu0
        %v610 = vmul.f32 %v605, 0.015625
        %611 = vst.msk [vmem:[%s217] sm:$0xff] %vm260, %v610
        %s612 = sand.u32 %s137, 1
        %s613 = scalar_lea.sflag [#allocation3], %s612
        %s614 = sand.u32 %s137, 1
        %s615 = smul.addr %s614, 8
        %s616 = scalar_lea.vmem [#allocation2], %s615
        // Predicated region
        $region41: #{tpu_custom_call.1} parent=39 // pred_check
          %p617 = pneg %p147
        $region42: #{tpu_custom_call.1} parent=39 // pred_check_branch
          %619 = sbr.rel (%p617) target = $region44
        $region43: #{tpu_custom_call.1} parent=39 // pred_region
          %s621 = ssub.s32 128, 128
          %622 = vsyncadd %s613, %s621
          %s623 = smul.addr %s19, 128
          %s624 = scalar_lea.hbm %s5, %s623
          %s626 = sshll.u32 %s616, 4
          %s627 = int_to_ptr.vmem [resolvable:$true] %s626
          %629 = dma.vmem_to_hbm [thread:$0]  %s627, 128, %s624, %s613
        $region44: #{tpu_custom_call.1} parent=39 // pred_fallthru
          _
      $region40: #{tpu_custom_call.1} parent=5 // pred_fallthru
        _
      %p630 = scmp.le.s32.totalorder 2, %s14
      // Predicated region
      $region45: #{tpu_custom_call.1} parent=5 // pred_check
        %p631 = pneg %p630
      $region46: #{tpu_custom_call.1} parent=5 // pred_check_branch
        %633 = sbr.rel (%p631) target = $region48
      $region47: #{tpu_custom_call.1} parent=5 // pred_region
        %s634 = ssub.s32 %s14, 2
        // Predicated region
        $region49: #{tpu_custom_call.1} parent=47 // pred_check
          %p635 = pneg %p153
        $region50: #{tpu_custom_call.1} parent=47 // pred_check_branch
          %637 = sbr.rel (%p635) target = $region52
        $region51: #{tpu_custom_call.1} parent=47 // pred_region
          %s638 = sand.u32 %s138, 1
          %s639 = scalar_lea.sflag [#allocation3], %s638
          %s640 = sand.u32 %s138, 1
          %s641 = smul.addr %s640, 8
          %s642 = scalar_lea.vmem [#allocation2], %s641
          %643 = dma.done %s639, 128
        $region52: #{tpu_custom_call.1} parent=47 // pred_fallthru
          _
      $region48: #{tpu_custom_call.1} parent=5 // pred_fallthru
        _
    $region6: #{tpu_custom_call.1} parent=1 // loop_footer
      %s18 = sadd.s32 1, %s14
    $region7: #{tpu_custom_call.1} parent=1 // loop_footer_branch
      %13 = sbr.rel target = $region3
    $region8: #{tpu_custom_call.1} parent=1 // loop_exit
      _
    %644 = vsyncpa [#allocation3], 1
    %s645 = scalar_lea.sflag [#allocation3], 1
    %646 = vsyncpa %s645, 1

</llo_original>
